<compile_context>
chip_gen: v5e
topology: v5e:2x2
jax: 0.10.0
libtpu: 0.0.40
codegen_flags: <defaults>
</compile_context>

<pallas_src>
import functools

import jax
import jax.numpy as jnp
from jax.experimental import pallas as pl
from jax.experimental.pallas import tpu as pltpu

_LANE = 128
_SUBLANE = 8


def _darts_kernel(x_ref, beta_ref, o_ref, *, tile_rows):
    # x_ref:    (tile_rows, tile_cols) current block of the flattened input
    # beta_ref: (rows_pad, 1)          full per-row beta, VMEM-resident
    # o_ref:    (tile_rows, tile_cols)
    r0 = pl.multiple_of(pl.program_id(0) * tile_rows, _SUBLANE)
    b = beta_ref[pl.ds(r0, tile_rows), :]        # (tile_rows, 1) -> lane broadcast
    x = x_ref[...]
    x3 = x * x * x                               # Power(3)
    x6 = x3 * x3                                 # Mul() on stack([x3, x3])
    # BetaMix: b*x6 + (1-b)*x3  ==  x3 + b*(x6 - x3)
    o_ref[...] = x3 + b * (x6 - x3)


def darts_func_complex(
    x_nchw: jnp.ndarray,
    beta: jnp.ndarray,
    *,
    block_bytes: int = 2 * 1024 * 1024,   # per streamed f32 block (x / out each)
    max_tile_cols: int = 2048,            # multiple of 128
    max_tile_rows: int = 512,
) -> jnp.ndarray:
    """x_nchw: (N, C, H, W) float32; beta: (C,) float32 -> (N, C, H, W)."""
    N, C, H, W = x_nchw.shape
    rows, cols = N * C, H * W

    x2d = x_nchw.reshape(rows, cols).astype(jnp.float32)
    # per-row beta: row index = n*C + c -> beta[c]
    beta_rows = jnp.tile(beta.astype(jnp.float32), (N,)).reshape(rows, 1)

    # ---- lane-dense, VMEM-budgeted tile selection ---------------------------
    cols_128 = pl.cdiv(cols, _LANE) * _LANE                 # lane multiple
    tile_cols = min(cols_128, max_tile_cols)                # multiple of 128
    cols_pad = pl.cdiv(cols_128, tile_cols) * tile_cols

    rows_8 = pl.cdiv(rows, _SUBLANE) * _SUBLANE
    rows_budget = max(
        _SUBLANE, (block_bytes // (4 * tile_cols)) // _SUBLANE * _SUBLANE
    )
    tile_rows = min(rows_8, max_tile_rows, rows_budget)
    # v7x megacore: give the parallel row axis >=2 steps when there is work.
    if rows_8 >= 2 * _SUBLANE and rows_8 // tile_rows < 2:
        tile_rows = max(_SUBLANE, (rows_8 // 2) // _SUBLANE * _SUBLANE)
    rows_pad = pl.cdiv(rows_8, tile_rows) * tile_rows

    # ---- pad to the tiled shape (zeros; padded region is discarded) ---------
    if (rows_pad, cols_pad) != (rows, cols):
        x2d = jnp.pad(x2d, ((0, rows_pad - rows), (0, cols_pad - cols)))
    if rows_pad != rows:
        beta_rows = jnp.pad(beta_rows, ((0, rows_pad - rows), (0, 0)))

    grid = (rows_pad // tile_rows, cols_pad // tile_cols)

    out2d = pl.pallas_call(
        functools.partial(_darts_kernel, tile_rows=tile_rows),
        out_shape=jax.ShapeDtypeStruct((rows_pad, cols_pad), jnp.float32),
        grid_spec=pltpu.PrefetchScalarGridSpec(
            num_scalar_prefetch=0,
            grid=grid,
            in_specs=[
                pl.BlockSpec((tile_rows, tile_cols), lambda i, j: (i, j)),
                # full beta, constant block index -> single DMA, stays resident
                pl.BlockSpec((rows_pad, 1), lambda i, j: (0, 0)),
            ],
            out_specs=pl.BlockSpec((tile_rows, tile_cols), lambda i, j: (i, j)),
        ),
        compiler_params=pltpu.CompilerParams(
            dimension_semantics=("parallel", "parallel"),
            # 2 streamed arrays x 2 buffers x ~2 MiB + resident beta << 48 MiB;
            # explicit limit keeps headroom on v5e/v6e and stays within v7x's 64 MiB.
            vmem_limit_bytes=48 * 1024 * 1024,
        ),
    )(x2d, beta_rows)

    return out2d[:rows, :cols].reshape(N, C, H, W).astype(x_nchw.dtype)


def _reference(x_nchw, beta):
    x3 = x_nchw ** 3
    x6 = x3 * x3
    b = beta.reshape(1, -1, 1, 1)
    return b * x6 + (1.0 - b) * x3


if __name__ == "__main__":
    key = jax.random.PRNGKey(0)
    kx, kb = jax.random.split(key)

    N, C, H, W = 2, 4, 16, 16
    x = jax.random.normal(kx, (N, C, H, W), dtype=jnp.float32)
    # BetaMix parameter (torch.randn(channels) in the module); deterministic here.
    beta = jax.random.normal(kb, (C,), dtype=jnp.float32)

    out = jax.block_until_ready(darts_func_complex(x, beta))
    ref = _reference(x, beta)

    assert out.shape == (N, C, H, W)
    # factored blend is algebraically identical; allow f32 reassociation slack
    assert jnp.allclose(out, ref, atol=1e-3, rtol=1e-4), "mismatch vs reference"

    print("KERNEL_OK")
</pallas_src>

<mosaic_0001>
module attributes {stable_mosaic.version = 11 : i64} {
  func.func @_darts_kernel(%arg0: i32, %arg1: i32, %arg2: memref<8x256xf32, #tpu.memory_space<vmem>>, %arg3: memref<8x1xf32, #tpu.memory_space<vmem>>, %arg4: memref<8x256xf32, #tpu.memory_space<vmem>>) attributes {dimension_semantics = [#tpu.dimension_semantics<parallel>, #tpu.dimension_semantics<parallel>], iteration_bounds = array<i64: 1, 1>, scalar_prefetch = 0 : i64, scratch_operands = 0 : i64, tpu.core_type = #tpu.core_type<tc>, window_params = [{transform_indices = @transform_0, window_bounds = array<i64: 8, 256>}, {pipeline_mode = #tpu.pipeline_mode<synchronous>, transform_indices = @transform_1, window_bounds = array<i64: 8, 1>}, {transform_indices = @transform_2, window_bounds = array<i64: 8, 256>}]} {
    %c8_i32 = arith.constant 8 : i32
    %0 = arith.muli %arg0, %c8_i32 : i32
    %1 = tpu.assume_multiple %0, 8 : i32
    %2 = arith.index_cast %1 : i32 to index
    %c0 = arith.constant 0 : index
    %3 = vector.load %arg3[%2, %c0] : memref<8x1xf32, #tpu.memory_space<vmem>>, vector<8x1xf32>
    %c0_0 = arith.constant 0 : index
    %c0_1 = arith.constant 0 : index
    %4 = vector.load %arg2[%c0_0, %c0_1] : memref<8x256xf32, #tpu.memory_space<vmem>>, vector<8x256xf32>
    %5 = arith.mulf %4, %4 : vector<8x256xf32>
    %6 = arith.mulf %5, %4 : vector<8x256xf32>
    %7 = arith.mulf %6, %6 : vector<8x256xf32>
    %8 = arith.subf %7, %6 : vector<8x256xf32>
    %9 = vector.broadcast %3 : vector<8x1xf32> to vector<8x256xf32>
    %10 = arith.mulf %9, %8 : vector<8x256xf32>
    %11 = arith.addf %6, %10 : vector<8x256xf32>
    %c0_2 = arith.constant 0 : index
    %c0_3 = arith.constant 0 : index
    %12 = vector.load %arg4[%c0_2, %c0_3] : memref<8x256xf32, #tpu.memory_space<vmem>>, vector<8x256xf32>
    tpu.vector_store %arg4[%c0_2, %c0_3], %11 {strides = array<i32>} : memref<8x256xf32, #tpu.memory_space<vmem>>, vector<8x256xf32>,
    return
  }
  func.func @transform_0(%arg0: i32, %arg1: i32) -> (i32, i32) {
    %c0_i32 = arith.constant 0 : i32
    return %arg0, %arg1 : i32, i32
  }
  func.func @transform_1(%arg0: i32, %arg1: i32) -> (i32, i32) {
    %c0_i32 = arith.constant 0 : i32
    %c0_i32_0 = arith.constant 0 : i32
    %c0_i32_1 = arith.constant 0 : i32
    return %c0_i32, %c0_i32_0 : i32, i32
  }
  func.func @transform_2(%arg0: i32, %arg1: i32) -> (i32, i32) {
    %c0_i32 = arith.constant 0 : i32
    return %arg0, %arg1 : i32, i32
  }
}

</mosaic_0001>

<llo_original>
// kernel: tpu_custom_call.1
$region0: #{tpu_custom_call.1}
  #allocation0 [shape = 'u32[]', space=smem, size = 0x4, offset = 0x4, fixed_abs, tag = 'smem constant byte address 0x4 - core index']
  #allocation1 [shape = 'u32[72,128]{1,0:T(1,128)}', space=vmem, size = 0x9000, scoped, tag = 'internal scratch']
  %s0 = inlined_call_operand.hbm [shape: f32[8,256], index: 0, kind: input, shape index: {}]
  %s1 = inlined_call_operand.vmem [shape: f32[8,1], index: 1, kind: input, shape index: {}]
  %s2 = inlined_call_operand.hbm [shape: f32[8,256], index: 2, kind: output, shape index: {}]
  %s3 = sld [smem:[#allocation0]]
  $region22: #{tpu_custom_call.1} parent=0
    _
  %s5 = ssub.s32 1, %s3
  %s6 = scalar_select 0, %s5, %s3
  $region1: #{tpu_custom_call.1} parent=0
    #allocation2 [shape = 'u8[8192]{0}', space=vmem, size = 0x2000, scoped, tag = 'input window, operand 0, single buffered']
    #allocation3 [shape = 's32[1]{0}', space=sflag, size = 0x4, scoped, tag = 'scoped memory for tpu_custom_call.1']
    #allocation4 [shape = 's32[1]{0}', space=sflag, size = 0x4, scoped, tag = 'scoped memory for tpu_custom_call.1']
    #allocation5 [shape = 'u8[8192]{0}', space=vmem, size = 0x2000, scoped, tag = 'output window, operand 0, single buffered']
    %7 = vsyncpa [#allocation3], 0
    %8 = vsyncpa [#allocation4], 0
    // Predicated region
    $region2: #{tpu_custom_call.1} parent=1 // pred_check
      _
    $region3: #{tpu_custom_call.1} parent=1 // pred_check_branch
      %10 = sbr.rel (0) target = $region5
    $region4: #{tpu_custom_call.1} parent=1 // pred_region
      %12 = vsyncadd [#allocation3], 0
      %s14 = sshll.u32 %s0, 4
      %s15 = int_to_ptr.hbm [resolvable:$true] %s14
      %s16 = sshll.u32 [#allocation2], 4
      %s17 = int_to_ptr.vmem [resolvable:$true] %s16
      %19 = dma.hbm_to_vmem [thread:$0]  %s15, 256, %s17, [#allocation3]
    $region5: #{tpu_custom_call.1} parent=1 // pred_fallthru
      _
    // Predicated region
    $region6: #{tpu_custom_call.1} parent=1 // pred_check
      _
    $region7: #{tpu_custom_call.1} parent=1 // pred_check_branch
      %21 = sbr.rel (0) target = $region9
    $region8: #{tpu_custom_call.1} parent=1 // pred_region
      _
    $region9: #{tpu_custom_call.1} parent=1 // pred_fallthru
      _
    // Predicated region
    $region10: #{tpu_custom_call.1} parent=1 // pred_check
      _
    $region11: #{tpu_custom_call.1} parent=1 // pred_check_branch
      %23 = sbr.rel (0) target = $region13
    $region12: #{tpu_custom_call.1} parent=1 // pred_region
      %25 = dma.done [#allocation3], 256
    $region13: #{tpu_custom_call.1} parent=1 // pred_fallthru
      _
    %s26 = smul.u32 0, 8
    %s27 = scalar_lea.vmem %s1, %s26
    %v28 = vld [vmem:[%s27] sm:$0xff]
    %v29 = vld [vmem:[#allocation2] sm:$0xff]
    %v30 = vld [vmem:[#allocation2 + $0x8] sm:$0xff]
    %v31 = vmul.f32 %v29, %v29
    %v32 = vmul.f32 %v30, %v30
    %v33 = vmul.f32 %v31, %v29
    %v34 = vmul.f32 %v32, %v30
    %v35 = vmul.f32 %v33, %v33
    %v36 = vmul.f32 %v34, %v34
    %v37 = vsub.f32 %v35, %v33
    %v38 = vsub.f32 %v36, %v34
    %40 = vset.pattern.permute.xlu0 0
    %41 = vperm.xlu0 %40, %v28
    %v42 = vpop.permute.xlu0 %41
    %v44 = vmul.f32 %v42, %v37
    %v45 = vmul.f32 %v42, %v38
    %v46 = vadd.f32 %v33, %v44
    %v47 = vadd.f32 %v34, %v45
    %48 = vst [vmem:[#allocation5] sm:$0xff] %v46
    %49 = vst [vmem:[#allocation5 + $0x8] sm:$0xff] %v47
    // Predicated region
    $region14: #{tpu_custom_call.1} parent=1 // pred_check
      _
    $region15: #{tpu_custom_call.1} parent=1 // pred_check_branch
      %51 = sbr.rel (0) target = $region17
    $region16: #{tpu_custom_call.1} parent=1 // pred_region
      %53 = vsyncadd [#allocation4], 0
      %s55 = sshll.u32 [#allocation5], 4
      %s56 = int_to_ptr.vmem [resolvable:$true] %s55
      %s57 = sshll.u32 %s2, 4
      %s58 = int_to_ptr.hbm [resolvable:$true] %s57
      %60 = dma.vmem_to_hbm [thread:$0]  %s56, 256, %s58, [#allocation4]
    $region17: #{tpu_custom_call.1} parent=1 // pred_fallthru
      _
    // Predicated region
    $region18: #{tpu_custom_call.1} parent=1 // pred_check
      _
    $region19: #{tpu_custom_call.1} parent=1 // pred_check_branch
      %62 = sbr.rel (0) target = $region21
    $region20: #{tpu_custom_call.1} parent=1 // pred_region
      %64 = dma.done [#allocation4], 256
    $region21: #{tpu_custom_call.1} parent=1 // pred_fallthru
      _
    %65 = vsyncpa [#allocation3], 1
    %66 = vsyncpa [#allocation4], 1

</llo_original>
